<compile_context>
chip_gen: v7x
topology: tpu7x:2x2x1
jax: 0.10.0
libtpu: 0.0.40
codegen_flags: <defaults>
</compile_context>

<pallas_src>
import functools

import jax
import jax.numpy as jnp
from jax import lax
from jax.experimental import pallas as pl
from jax.experimental.pallas import tpu as pltpu


def _round_up(v, m):
    return (v + m - 1) // m * m


def _vmem_capacity():
    try:
        return int(pltpu.get_tpu_info().vmem_capacity_bytes)
    except Exception:  # pragma: no cover - conservative fallback (v7x physical)
        return 64 << 20


# ---------------------------------------------------------------------------
# Main path: one (nb, HW, C) block per grid step, two chunked passes in VMEM.
# ---------------------------------------------------------------------------
def _grn_block_kernel(x_ref, gamma_ref, beta_ref, o_ref, *,
                      n8, tail, inv_c, wide_acc, f32_epilogue):
    nb, _, c = x_ref.shape
    base = n8 * 8
    unroll = True if n8 <= 8 else 4

    # ---- Pass 1: per-channel sum of squares over spatial rows (f32) --------
    if wide_acc:
        # (nb, 8, C) carry: pure VPU mul/add per 8-row chunk, one cross-sublane
        # 8->1 reduce after the loop (no per-chunk XLU reduction).
        def ssq_body(i, acc):
            r = pl.multiple_of(i * 8, 8)
            v = x_ref[:, pl.ds(r, 8), :].astype(jnp.float32)
            return acc + v * v

        acc = lax.fori_loop(0, n8, ssq_body,
                            jnp.zeros((nb, 8, c), jnp.float32), unroll=unroll)
        ssq = jnp.sum(acc, axis=1, keepdims=True)                 # (nb, 1, C)
    else:
        # Very wide C: keep the carry narrow to stay inside the vreg file.
        def ssq_body(i, acc):
            r = pl.multiple_of(i * 8, 8)
            v = x_ref[:, pl.ds(r, 8), :].astype(jnp.float32)
            return acc + jnp.sum(v * v, axis=1, keepdims=True)

        ssq = lax.fori_loop(0, n8, ssq_body,
                            jnp.zeros((nb, 1, c), jnp.float32), unroll=unroll)
    if tail:
        vt = x_ref[:, base:base + tail, :].astype(jnp.float32)
        ssq = ssq + jnp.sum(vt * vt, axis=1, keepdims=True)

    # Gx = ||x||_2 over (H, W);  Nx = Gx / (mean_C(Gx) + 1e-6).
    gx = jnp.sqrt(ssq)                                            # (nb, 1, C)
    denom = jnp.sum(gx, axis=-1, keepdims=True) * inv_c + 1e-6    # (nb, 1, 1)
    nx = gx / denom                                               # (nb, 1, C)

    # Folded epilogue: gamma*(x*Nx) + beta + x == x*(gamma*Nx + 1) + beta.
    gamma = gamma_ref[...].astype(jnp.float32)                    # (1, C)
    beta = beta_ref[...].astype(jnp.float32)                      # (1, C)
    scale = gamma * nx + 1.0                                      # (nb, 1, C)

    if f32_epilogue:
        def apply(v):
            return (v.astype(jnp.float32) * scale + beta).astype(o_ref.dtype)
    else:
        scale_e = scale.astype(o_ref.dtype)
        beta_e = beta.astype(o_ref.dtype)

        def apply(v):
            return v * scale_e + beta_e

    # ---- Pass 2: chunked elementwise scale + shift --------------------------
    def ew_body(i, carry):
        r = pl.multiple_of(i * 8, 8)
        o_ref[:, pl.ds(r, 8), :] = apply(x_ref[:, pl.ds(r, 8), :])
        return carry

    lax.fori_loop(0, n8, ew_body, 0, unroll=unroll)
    if tail:
        o_ref[:, base:base + tail, :] = apply(x_ref[:, base:base + tail, :])


# ---------------------------------------------------------------------------
# Fallback path for blocks too large to pipeline in VMEM (e.g. v7x 64 MiB):
# HW-tiled two-call sweep (reduce ssq, then apply).  Costs one extra read of x.
# ---------------------------------------------------------------------------
def _grn_tiled_reduce_kernel(x_ref, ssq_ref, *, tile_hw, hw):
    t = pl.program_id(1)

    @pl.when(t == 0)
    def _():
        ssq_ref[...] = jnp.zeros_like(ssq_ref)

    x = x_ref[...].astype(jnp.float32)                            # (tile_hw, C)
    if hw % tile_hw:
        # Mask the out-of-range rows of the last (partial) tile.
        rows = lax.broadcasted_iota(jnp.int32, x.shape, 0)
        x = jnp.where(t * tile_hw + rows < hw, x, 0.0)
    ssq_ref[...] = ssq_ref[...] + jnp.sum(x * x, axis=0, keepdims=True)


def _grn_tiled_apply_kernel(ssq_ref, gamma_ref, beta_ref, x_ref, o_ref, *,
                            inv_c, f32_epilogue):
    gx = jnp.sqrt(ssq_ref[...])                                   # (1, C)
    denom = jnp.sum(gx, axis=-1, keepdims=True) * inv_c + 1e-6
    nx = gx / denom
    gamma = gamma_ref[...].astype(jnp.float32)
    beta = beta_ref[...].astype(jnp.float32)
    scale = gamma * nx + 1.0
    v = x_ref[...]
    if f32_epilogue:
        o_ref[...] = (v.astype(jnp.float32) * scale + beta).astype(o_ref.dtype)
    else:
        o_ref[...] = v * scale.astype(o_ref.dtype) + beta.astype(o_ref.dtype)


# ---------------------------------------------------------------------------
# Wrapper
# ---------------------------------------------------------------------------
def grn(x, gamma, beta, *, force_path=None, tile_hw=None, precise_epilogue=False):
    """GRN forward.

    Args:
      x:     (N, H, W, C) channels-last input.
      gamma: (1, 1, 1, C) scale parameter.
      beta:  (1, 1, 1, C) shift parameter.
      force_path: None (auto), "block", or "tiled" (debug/testing).
      tile_hw: optional spatial tile for the tiled path.
      precise_epilogue: force the f32 epilogue even for bf16 inputs.
    Returns:
      (N, H, W, C) output, same dtype as x.
    """
    N, H, W, C = x.shape
    hw = H * W
    itemsize = jnp.dtype(x.dtype).itemsize
    hw8 = _round_up(hw, 8)
    c128 = _round_up(C, 128)
    inv_c = 1.0 / float(C)
    f32_epilogue = bool(precise_epilogue) or x.dtype == jnp.float32

    # Free reshapes (contiguous merge/split) — no padding, no output slice.
    x3 = x.reshape(N, hw, C)
    g2 = gamma.reshape(1, C)
    b2 = beta.reshape(1, C)

    per_batch = hw8 * c128 * itemsize          # VMEM footprint of one batch block
    cap = _vmem_capacity()
    usable = cap - (4 << 20)
    overhead = 4 << 20                         # params + scratch + slack

    # Batch small per-batch blocks together (fewer grid steps, bigger DMAs).
    nb = 1
    for cand in range(1, min(N, 8) + 1):
        if N % cand == 0 and cand * per_batch <= (4 << 20):
            nb = cand
    block_bytes = nb * per_batch

    path = force_path
    if path is None:
        path = "block" if (2 * block_bytes + overhead) <= usable else "tiled"

    if path == "block":
        # Pick buffering so the pipeline fits VMEM (v7x has only 64 MiB).
        in_mode = out_mode = None
        if 4 * block_bytes + overhead <= usable:
            need = 4 * block_bytes + overhead
        elif 3 * block_bytes + overhead <= usable:
            out_mode = pl.Buffered(1)
            need = 3 * block_bytes + overhead
        else:
            in_mode = out_mode = pl.Buffered(1)
            need = 2 * block_bytes + overhead
        vmem_limit = int(min(usable, max(need + (8 << 20), 32 << 20)))

        def xspec(mode):
            kw = {} if mode is None else {"pipeline_mode": mode}
            return pl.BlockSpec((nb, hw, C), lambda i: (i, 0, 0), **kw)

        kernel = functools.partial(
            _grn_block_kernel,
            n8=hw // 8, tail=hw % 8, inv_c=inv_c,
            wide_acc=(nb * 8 * c128) <= 16 * 1024,
            f32_epilogue=f32_epilogue)

        out3 = pl.pallas_call(
            kernel,
            out_shape=jax.ShapeDtypeStruct((N, hw, C), x.dtype),
            grid_spec=pltpu.PrefetchScalarGridSpec(
                num_scalar_prefetch=0,
                grid=(N // nb,),
                in_specs=[
                    xspec(in_mode),
                    pl.BlockSpec((1, C), lambda i: (0, 0)),   # constant idx: no re-DMA
                    pl.BlockSpec((1, C), lambda i: (0, 0)),
                ],
                out_specs=xspec(out_mode),
            ),
            compiler_params=pltpu.CompilerParams(
                dimension_semantics=("parallel",),
                vmem_limit_bytes=vmem_limit,
            ),
        )(x3, g2, b2)
        return out3.reshape(N, H, W, C)

    # ---- Tiled two-call fallback --------------------------------------------
    if tile_hw is None:
        budget = max(usable - overhead, 1 << 20) // 6
        tile_hw = max(8, min(hw8, (budget // (c128 * itemsize)) // 8 * 8))
    tile_hw = int(tile_hw)
    num_tiles = pl.cdiv(hw, tile_hw)
    tile_bytes = tile_hw * c128 * itemsize
    vmem_limit = int(min(usable, max(6 * tile_bytes + (8 << 20), 32 << 20)))

    ssq = pl.pallas_call(
        functools.partial(_grn_tiled_reduce_kernel, tile_hw=tile_hw, hw=hw),
        out_shape=jax.ShapeDtypeStruct((N, 1, C), jnp.float32),
        grid_spec=pltpu.PrefetchScalarGridSpec(
            num_scalar_prefetch=0,
            grid=(N, num_tiles),
            in_specs=[pl.BlockSpec((None, tile_hw, C), lambda b, t: (b, t, 0))],
            out_specs=pl.BlockSpec((None, 1, C), lambda b, t: (b, 0, 0)),
        ),
        compiler_params=pltpu.CompilerParams(
            dimension_semantics=("parallel", "arbitrary"),
            vmem_limit_bytes=vmem_limit),
    )(x3)

    out3 = pl.pallas_call(
        functools.partial(_grn_tiled_apply_kernel, inv_c=inv_c,
                          f32_epilogue=f32_epilogue),
        out_shape=jax.ShapeDtypeStruct((N, hw, C), x.dtype),
        grid_spec=pltpu.PrefetchScalarGridSpec(
            num_scalar_prefetch=0,
            grid=(N, num_tiles),
            in_specs=[
                pl.BlockSpec((None, 1, C), lambda b, t: (b, 0, 0)),
                pl.BlockSpec((1, C), lambda b, t: (0, 0)),
                pl.BlockSpec((1, C), lambda b, t: (0, 0)),
                pl.BlockSpec((None, tile_hw, C), lambda b, t: (b, t, 0)),
            ],
            out_specs=pl.BlockSpec((None, tile_hw, C), lambda b, t: (b, t, 0)),
        ),
        compiler_params=pltpu.CompilerParams(
            dimension_semantics=("parallel", "parallel"),
            vmem_limit_bytes=vmem_limit),
    )(ssq, g2, b2, x3)
    return out3.reshape(N, H, W, C)


def grn_reference(x, gamma, beta):
    """Pure-JAX reference matching the PyTorch module semantics."""
    xf = x.astype(jnp.float32)
    gx = jnp.sqrt(jnp.sum(xf * xf, axis=(1, 2), keepdims=True))   # (N,1,1,C)
    nx = gx / (jnp.mean(gx, axis=-1, keepdims=True) + 1e-6)       # (N,1,1,C)
    return (gamma * (xf * nx) + beta + xf).astype(x.dtype)


if __name__ == "__main__":
    key = jax.random.PRNGKey(0)
    kx, kg, kb = jax.random.split(key, 3)

    # Case 1: aligned-ish NHWC, f32, main block path (with nb-batching).
    N, H, W, C = 2, 8, 8, 32
    x = jax.random.normal(kx, (N, H, W, C), dtype=jnp.float32)
    gamma = 0.1 * jax.random.normal(kg, (1, 1, 1, C), dtype=jnp.float32)
    beta = 0.1 * jax.random.normal(kb, (1, 1, 1, C), dtype=jnp.float32)

    out = jax.block_until_ready(grn(x, gamma, beta))
    ref = grn_reference(x, gamma, beta)
    assert out.shape == (N, H, W, C)
    assert jnp.allclose(out, ref, atol=1e-5, rtol=1e-5)

    # Case 2: ragged HW (35 rows, not a multiple of 8) and small C — exercises
    # the in-kernel tail chunk (no wrapper padding) on the block path, and the
    # forced HW-tiled fallback path (masked partial tile).
    N2, H2, W2, C2 = 2, 7, 5, 48
    x2 = jax.random.normal(kx, (N2, H2, W2, C2), dtype=jnp.float32)
    g2 = 0.1 * jax.random.normal(kg, (1, 1, 1, C2), dtype=jnp.float32)
    b2 = 0.1 * jax.random.normal(kb, (1, 1, 1, C2), dtype=jnp.float32)
    ref2 = grn_reference(x2, g2, b2)

    out2 = jax.block_until_ready(grn(x2, g2, b2))
    assert jnp.allclose(out2, ref2, atol=1e-5, rtol=1e-5)

    out2t = jax.block_until_ready(grn(x2, g2, b2, force_path="tiled", tile_hw=16))
    assert jnp.allclose(out2t, ref2, atol=1e-5, rtol=1e-5)

    # Case 3: bf16 input — exercises the input-dtype epilogue (looser tol).
    xb = x.astype(jnp.bfloat16)
    refb = grn_reference(xb, gamma, beta)
    outb = jax.block_until_ready(grn(xb, gamma, beta))
    assert jnp.allclose(outb.astype(jnp.float32), refb.astype(jnp.float32),
                        atol=5e-2, rtol=5e-2)

    print("KERNEL_OK")
</pallas_src>

<mosaic_0001>
module attributes {stable_mosaic.version = 11 : i64} {
  func.func @_grn_block_kernel(%arg0: i32, %arg1: memref<2x64x32xf32, #tpu.memory_space<vmem>>, %arg2: memref<1x32xf32, #tpu.memory_space<vmem>>, %arg3: memref<1x32xf32, #tpu.memory_space<vmem>>, %arg4: memref<2x64x32xf32, #tpu.memory_space<vmem>>) attributes {dimension_semantics = [#tpu.dimension_semantics<parallel>], iteration_bounds = array<i64: 1>, scalar_prefetch = 0 : i64, scratch_operands = 0 : i64, tpu.core_type = #tpu.core_type<tc>, window_params = [{transform_indices = @transform_0, window_bounds = array<i64: 2, 64, 32>}, {pipeline_mode = #tpu.pipeline_mode<synchronous>, transform_indices = @transform_1, window_bounds = array<i64: 1, 32>}, {pipeline_mode = #tpu.pipeline_mode<synchronous>, transform_indices = @transform_2, window_bounds = array<i64: 1, 32>}, {transform_indices = @transform_3, window_bounds = array<i64: 2, 64, 32>}]} {
    %cst = arith.constant 0.000000e+00 : f32
    %0 = vector.broadcast %cst : f32 to vector<2x8x32xf32>
    %c0_i32 = arith.constant 0 : i32
    %c8_i32 = arith.constant 8 : i32
    %1 = arith.muli %c0_i32, %c8_i32 : i32
    %2 = tpu.assume_multiple %1, 8 : i32
    %c0 = arith.constant 0 : index
    %3 = arith.index_cast %2 : i32 to index
    %c0_0 = arith.constant 0 : index
    %4 = vector.load %arg1[%c0, %3, %c0_0] : memref<2x64x32xf32, #tpu.memory_space<vmem>>, vector<2x8x32xf32>
    %5 = arith.mulf %4, %4 : vector<2x8x32xf32>
    %6 = arith.addf %0, %5 : vector<2x8x32xf32>
    %c1_i32 = arith.constant 1 : i32
    %c8_i32_1 = arith.constant 8 : i32
    %7 = arith.muli %c1_i32, %c8_i32_1 : i32
    %8 = tpu.assume_multiple %7, 8 : i32
    %c0_2 = arith.constant 0 : index
    %9 = arith.index_cast %8 : i32 to index
    %c0_3 = arith.constant 0 : index
    %10 = vector.load %arg1[%c0_2, %9, %c0_3] : memref<2x64x32xf32, #tpu.memory_space<vmem>>, vector<2x8x32xf32>
    %11 = arith.mulf %10, %10 : vector<2x8x32xf32>
    %12 = arith.addf %6, %11 : vector<2x8x32xf32>
    %c2_i32 = arith.constant 2 : i32
    %c8_i32_4 = arith.constant 8 : i32
    %13 = arith.muli %c2_i32, %c8_i32_4 : i32
    %14 = tpu.assume_multiple %13, 8 : i32
    %c0_5 = arith.constant 0 : index
    %15 = arith.index_cast %14 : i32 to index
    %c0_6 = arith.constant 0 : index
    %16 = vector.load %arg1[%c0_5, %15, %c0_6] : memref<2x64x32xf32, #tpu.memory_space<vmem>>, vector<2x8x32xf32>
    %17 = arith.mulf %16, %16 : vector<2x8x32xf32>
    %18 = arith.addf %12, %17 : vector<2x8x32xf32>
    %c3_i32 = arith.constant 3 : i32
    %c8_i32_7 = arith.constant 8 : i32
    %19 = arith.muli %c3_i32, %c8_i32_7 : i32
    %20 = tpu.assume_multiple %19, 8 : i32
    %c0_8 = arith.constant 0 : index
    %21 = arith.index_cast %20 : i32 to index
    %c0_9 = arith.constant 0 : index
    %22 = vector.load %arg1[%c0_8, %21, %c0_9] : memref<2x64x32xf32, #tpu.memory_space<vmem>>, vector<2x8x32xf32>
    %23 = arith.mulf %22, %22 : vector<2x8x32xf32>
    %24 = arith.addf %18, %23 : vector<2x8x32xf32>
    %c4_i32 = arith.constant 4 : i32
    %c8_i32_10 = arith.constant 8 : i32
    %25 = arith.muli %c4_i32, %c8_i32_10 : i32
    %26 = tpu.assume_multiple %25, 8 : i32
    %c0_11 = arith.constant 0 : index
    %27 = arith.index_cast %26 : i32 to index
    %c0_12 = arith.constant 0 : index
    %28 = vector.load %arg1[%c0_11, %27, %c0_12] : memref<2x64x32xf32, #tpu.memory_space<vmem>>, vector<2x8x32xf32>
    %29 = arith.mulf %28, %28 : vector<2x8x32xf32>
    %30 = arith.addf %24, %29 : vector<2x8x32xf32>
    %c5_i32 = arith.constant 5 : i32
    %c8_i32_13 = arith.constant 8 : i32
    %31 = arith.muli %c5_i32, %c8_i32_13 : i32
    %32 = tpu.assume_multiple %31, 8 : i32
    %c0_14 = arith.constant 0 : index
    %33 = arith.index_cast %32 : i32 to index
    %c0_15 = arith.constant 0 : index
    %34 = vector.load %arg1[%c0_14, %33, %c0_15] : memref<2x64x32xf32, #tpu.memory_space<vmem>>, vector<2x8x32xf32>
    %35 = arith.mulf %34, %34 : vector<2x8x32xf32>
    %36 = arith.addf %30, %35 : vector<2x8x32xf32>
    %c6_i32 = arith.constant 6 : i32
    %c8_i32_16 = arith.constant 8 : i32
    %37 = arith.muli %c6_i32, %c8_i32_16 : i32
    %38 = tpu.assume_multiple %37, 8 : i32
    %c0_17 = arith.constant 0 : index
    %39 = arith.index_cast %38 : i32 to index
    %c0_18 = arith.constant 0 : index
    %40 = vector.load %arg1[%c0_17, %39, %c0_18] : memref<2x64x32xf32, #tpu.memory_space<vmem>>, vector<2x8x32xf32>
    %41 = arith.mulf %40, %40 : vector<2x8x32xf32>
    %42 = arith.addf %36, %41 : vector<2x8x32xf32>
    %c7_i32 = arith.constant 7 : i32
    %c8_i32_19 = arith.constant 8 : i32
    %43 = arith.muli %c7_i32, %c8_i32_19 : i32
    %44 = tpu.assume_multiple %43, 8 : i32
    %c0_20 = arith.constant 0 : index
    %45 = arith.index_cast %44 : i32 to index
    %c0_21 = arith.constant 0 : index
    %46 = vector.load %arg1[%c0_20, %45, %c0_21] : memref<2x64x32xf32, #tpu.memory_space<vmem>>, vector<2x8x32xf32>
    %47 = arith.mulf %46, %46 : vector<2x8x32xf32>
    %48 = arith.addf %42, %47 : vector<2x8x32xf32>
    %c8_i32_22 = arith.constant 8 : i32
    %cst_23 = arith.constant dense<0.000000e+00> : vector<2x32xf32>
    %49 = vector.multi_reduction <add>, %48, %cst_23 [1] : vector<2x8x32xf32> to vector<2x32xf32>
    %50 = vector.shape_cast %49 : vector<2x32xf32> to vector<2x1x32xf32>
    %51 = math.sqrt %50 : vector<2x1x32xf32>
    %cst_24 = arith.constant dense<0.000000e+00> : vector<2x1xf32>
    %52 = vector.multi_reduction <add>, %51, %cst_24 [2] : vector<2x1x32xf32> to vector<2x1xf32>
    %53 = vector.shape_cast %52 : vector<2x1xf32> to vector<2x1x1xf32>
    %cst_25 = arith.constant 3.125000e-02 : f32
    %54 = vector.broadcast %cst_25 : f32 to vector<2x1x1xf32>
    %55 = arith.mulf %53, %54 : vector<2x1x1xf32>
    %cst_26 = arith.constant 9.99999997E-7 : f32
    %56 = vector.broadcast %cst_26 : f32 to vector<2x1x1xf32>
    %57 = arith.addf %55, %56 : vector<2x1x1xf32>
    %58 = vector.broadcast %57 : vector<2x1x1xf32> to vector<2x1x32xf32>
    %59 = arith.divf %51, %58 : vector<2x1x32xf32>
    %c0_27 = arith.constant 0 : index
    %c0_28 = arith.constant 0 : index
    %60 = vector.load %arg2[%c0_27, %c0_28] : memref<1x32xf32, #tpu.memory_space<vmem>>, vector<1x32xf32>
    %c0_29 = arith.constant 0 : index
    %c0_30 = arith.constant 0 : index
    %61 = vector.load %arg3[%c0_29, %c0_30] : memref<1x32xf32, #tpu.memory_space<vmem>>, vector<1x32xf32>
    %62 = vector.shape_cast %60 : vector<1x32xf32> to vector<1x1x32xf32>
    %63 = vector.broadcast %62 : vector<1x1x32xf32> to vector<2x1x32xf32>
    %64 = arith.mulf %63, %59 : vector<2x1x32xf32>
    %cst_31 = arith.constant 1.000000e+00 : f32
    %65 = vector.broadcast %cst_31 : f32 to vector<2x1x32xf32>
    %66 = arith.addf %64, %65 : vector<2x1x32xf32>
    %c0_i32_32 = arith.constant 0 : i32
    %c8_i32_33 = arith.constant 8 : i32
    %67 = arith.muli %c0_i32_32, %c8_i32_33 : i32
    %68 = tpu.assume_multiple %67, 8 : i32
    %c0_34 = arith.constant 0 : index
    %69 = arith.index_cast %68 : i32 to index
    %c0_35 = arith.constant 0 : index
    %70 = vector.load %arg1[%c0_34, %69, %c0_35] : memref<2x64x32xf32, #tpu.memory_space<vmem>>, vector<2x8x32xf32>
    %71 = vector.broadcast %66 : vector<2x1x32xf32> to vector<2x8x32xf32>
    %72 = arith.mulf %70, %71 : vector<2x8x32xf32>
    %73 = vector.shape_cast %61 : vector<1x32xf32> to vector<1x1x32xf32>
    %74 = vector.broadcast %73 : vector<1x1x32xf32> to vector<2x8x32xf32>
    %75 = arith.addf %72, %74 : vector<2x8x32xf32>
    %c0_36 = arith.constant 0 : index
    %76 = arith.index_cast %68 : i32 to index
    %c0_37 = arith.constant 0 : index
    %77 = vector.load %arg4[%c0_36, %76, %c0_37] : memref<2x64x32xf32, #tpu.memory_space<vmem>>, vector<2x8x32xf32>
    tpu.vector_store %arg4[%c0_36, %76, %c0_37], %75 {strides = array<i32>} : memref<2x64x32xf32, #tpu.memory_space<vmem>>, vector<2x8x32xf32>,
    %c1_i32_38 = arith.constant 1 : i32
    %c8_i32_39 = arith.constant 8 : i32
    %78 = arith.muli %c1_i32_38, %c8_i32_39 : i32
    %79 = tpu.assume_multiple %78, 8 : i32
    %c0_40 = arith.constant 0 : index
    %80 = arith.index_cast %79 : i32 to index
    %c0_41 = arith.constant 0 : index
    %81 = vector.load %arg1[%c0_40, %80, %c0_41] : memref<2x64x32xf32, #tpu.memory_space<vmem>>, vector<2x8x32xf32>
    %82 = vector.broadcast %66 : vector<2x1x32xf32> to vector<2x8x32xf32>
    %83 = arith.mulf %81, %82 : vector<2x8x32xf32>
    %84 = vector.shape_cast %61 : vector<1x32xf32> to vector<1x1x32xf32>
    %85 = vector.broadcast %84 : vector<1x1x32xf32> to vector<2x8x32xf32>
    %86 = arith.addf %83, %85 : vector<2x8x32xf32>
    %c0_42 = arith.constant 0 : index
    %87 = arith.index_cast %79 : i32 to index
    %c0_43 = arith.constant 0 : index
    %88 = vector.load %arg4[%c0_42, %87, %c0_43] : memref<2x64x32xf32, #tpu.memory_space<vmem>>, vector<2x8x32xf32>
    tpu.vector_store %arg4[%c0_42, %87, %c0_43], %86 {strides = array<i32>} : memref<2x64x32xf32, #tpu.memory_space<vmem>>, vector<2x8x32xf32>,
    %c2_i32_44 = arith.constant 2 : i32
    %c8_i32_45 = arith.constant 8 : i32
    %89 = arith.muli %c2_i32_44, %c8_i32_45 : i32
    %90 = tpu.assume_multiple %89, 8 : i32
    %c0_46 = arith.constant 0 : index
    %91 = arith.index_cast %90 : i32 to index
    %c0_47 = arith.constant 0 : index
    %92 = vector.load %arg1[%c0_46, %91, %c0_47] : memref<2x64x32xf32, #tpu.memory_space<vmem>>, vector<2x8x32xf32>
    %93 = vector.broadcast %66 : vector<2x1x32xf32> to vector<2x8x32xf32>
    %94 = arith.mulf %92, %93 : vector<2x8x32xf32>
    %95 = vector.shape_cast %61 : vector<1x32xf32> to vector<1x1x32xf32>
    %96 = vector.broadcast %95 : vector<1x1x32xf32> to vector<2x8x32xf32>
    %97 = arith.addf %94, %96 : vector<2x8x32xf32>
    %c0_48 = arith.constant 0 : index
    %98 = arith.index_cast %90 : i32 to index
    %c0_49 = arith.constant 0 : index
    %99 = vector.load %arg4[%c0_48, %98, %c0_49] : memref<2x64x32xf32, #tpu.memory_space<vmem>>, vector<2x8x32xf32>
    tpu.vector_store %arg4[%c0_48, %98, %c0_49], %97 {strides = array<i32>} : memref<2x64x32xf32, #tpu.memory_space<vmem>>, vector<2x8x32xf32>,
    %c3_i32_50 = arith.constant 3 : i32
    %c8_i32_51 = arith.constant 8 : i32
    %100 = arith.muli %c3_i32_50, %c8_i32_51 : i32
    %101 = tpu.assume_multiple %100, 8 : i32
    %c0_52 = arith.constant 0 : index
    %102 = arith.index_cast %101 : i32 to index
    %c0_53 = arith.constant 0 : index
    %103 = vector.load %arg1[%c0_52, %102, %c0_53] : memref<2x64x32xf32, #tpu.memory_space<vmem>>, vector<2x8x32xf32>
    %104 = vector.broadcast %66 : vector<2x1x32xf32> to vector<2x8x32xf32>
    %105 = arith.mulf %103, %104 : vector<2x8x32xf32>
    %106 = vector.shape_cast %61 : vector<1x32xf32> to vector<1x1x32xf32>
    %107 = vector.broadcast %106 : vector<1x1x32xf32> to vector<2x8x32xf32>
    %108 = arith.addf %105, %107 : vector<2x8x32xf32>
    %c0_54 = arith.constant 0 : index
    %109 = arith.index_cast %101 : i32 to index
    %c0_55 = arith.constant 0 : index
    %110 = vector.load %arg4[%c0_54, %109, %c0_55] : memref<2x64x32xf32, #tpu.memory_space<vmem>>, vector<2x8x32xf32>
    tpu.vector_store %arg4[%c0_54, %109, %c0_55], %108 {strides = array<i32>} : memref<2x64x32xf32, #tpu.memory_space<vmem>>, vector<2x8x32xf32>,
    %c4_i32_56 = arith.constant 4 : i32
    %c8_i32_57 = arith.constant 8 : i32
    %111 = arith.muli %c4_i32_56, %c8_i32_57 : i32
    %112 = tpu.assume_multiple %111, 8 : i32
    %c0_58 = arith.constant 0 : index
    %113 = arith.index_cast %112 : i32 to index
    %c0_59 = arith.constant 0 : index
    %114 = vector.load %arg1[%c0_58, %113, %c0_59] : memref<2x64x32xf32, #tpu.memory_space<vmem>>, vector<2x8x32xf32>
    %115 = vector.broadcast %66 : vector<2x1x32xf32> to vector<2x8x32xf32>
    %116 = arith.mulf %114, %115 : vector<2x8x32xf32>
    %117 = vector.shape_cast %61 : vector<1x32xf32> to vector<1x1x32xf32>
    %118 = vector.broadcast %117 : vector<1x1x32xf32> to vector<2x8x32xf32>
    %119 = arith.addf %116, %118 : vector<2x8x32xf32>
    %c0_60 = arith.constant 0 : index
    %120 = arith.index_cast %112 : i32 to index
    %c0_61 = arith.constant 0 : index
    %121 = vector.load %arg4[%c0_60, %120, %c0_61] : memref<2x64x32xf32, #tpu.memory_space<vmem>>, vector<2x8x32xf32>
    tpu.vector_store %arg4[%c0_60, %120, %c0_61], %119 {strides = array<i32>} : memref<2x64x32xf32, #tpu.memory_space<vmem>>, vector<2x8x32xf32>,
    %c5_i32_62 = arith.constant 5 : i32
    %c8_i32_63 = arith.constant 8 : i32
    %122 = arith.muli %c5_i32_62, %c8_i32_63 : i32
    %123 = tpu.assume_multiple %122, 8 : i32
    %c0_64 = arith.constant 0 : index
    %124 = arith.index_cast %123 : i32 to index
    %c0_65 = arith.constant 0 : index
    %125 = vector.load %arg1[%c0_64, %124, %c0_65] : memref<2x64x32xf32, #tpu.memory_space<vmem>>, vector<2x8x32xf32>
    %126 = vector.broadcast %66 : vector<2x1x32xf32> to vector<2x8x32xf32>
    %127 = arith.mulf %125, %126 : vector<2x8x32xf32>
    %128 = vector.shape_cast %61 : vector<1x32xf32> to vector<1x1x32xf32>
    %129 = vector.broadcast %128 : vector<1x1x32xf32> to vector<2x8x32xf32>
    %130 = arith.addf %127, %129 : vector<2x8x32xf32>
    %c0_66 = arith.constant 0 : index
    %131 = arith.index_cast %123 : i32 to index
    %c0_67 = arith.constant 0 : index
    %132 = vector.load %arg4[%c0_66, %131, %c0_67] : memref<2x64x32xf32, #tpu.memory_space<vmem>>, vector<2x8x32xf32>
    tpu.vector_store %arg4[%c0_66, %131, %c0_67], %130 {strides = array<i32>} : memref<2x64x32xf32, #tpu.memory_space<vmem>>, vector<2x8x32xf32>,
    %c6_i32_68 = arith.constant 6 : i32
    %c8_i32_69 = arith.constant 8 : i32
    %133 = arith.muli %c6_i32_68, %c8_i32_69 : i32
    %134 = tpu.assume_multiple %133, 8 : i32
    %c0_70 = arith.constant 0 : index
    %135 = arith.index_cast %134 : i32 to index
    %c0_71 = arith.constant 0 : index
    %136 = vector.load %arg1[%c0_70, %135, %c0_71] : memref<2x64x32xf32, #tpu.memory_space<vmem>>, vector<2x8x32xf32>
    %137 = vector.broadcast %66 : vector<2x1x32xf32> to vector<2x8x32xf32>
    %138 = arith.mulf %136, %137 : vector<2x8x32xf32>
    %139 = vector.shape_cast %61 : vector<1x32xf32> to vector<1x1x32xf32>
    %140 = vector.broadcast %139 : vector<1x1x32xf32> to vector<2x8x32xf32>
    %141 = arith.addf %138, %140 : vector<2x8x32xf32>
    %c0_72 = arith.constant 0 : index
    %142 = arith.index_cast %134 : i32 to index
    %c0_73 = arith.constant 0 : index
    %143 = vector.load %arg4[%c0_72, %142, %c0_73] : memref<2x64x32xf32, #tpu.memory_space<vmem>>, vector<2x8x32xf32>
    tpu.vector_store %arg4[%c0_72, %142, %c0_73], %141 {strides = array<i32>} : memref<2x64x32xf32, #tpu.memory_space<vmem>>, vector<2x8x32xf32>,
    %c7_i32_74 = arith.constant 7 : i32
    %c8_i32_75 = arith.constant 8 : i32
    %144 = arith.muli %c7_i32_74, %c8_i32_75 : i32
    %145 = tpu.assume_multiple %144, 8 : i32
    %c0_76 = arith.constant 0 : index
    %146 = arith.index_cast %145 : i32 to index
    %c0_77 = arith.constant 0 : index
    %147 = vector.load %arg1[%c0_76, %146, %c0_77] : memref<2x64x32xf32, #tpu.memory_space<vmem>>, vector<2x8x32xf32>
    %148 = vector.broadcast %66 : vector<2x1x32xf32> to vector<2x8x32xf32>
    %149 = arith.mulf %147, %148 : vector<2x8x32xf32>
    %150 = vector.shape_cast %61 : vector<1x32xf32> to vector<1x1x32xf32>
    %151 = vector.broadcast %150 : vector<1x1x32xf32> to vector<2x8x32xf32>
    %152 = arith.addf %149, %151 : vector<2x8x32xf32>
    %c0_78 = arith.constant 0 : index
    %153 = arith.index_cast %145 : i32 to index
    %c0_79 = arith.constant 0 : index
    %154 = vector.load %arg4[%c0_78, %153, %c0_79] : memref<2x64x32xf32, #tpu.memory_space<vmem>>, vector<2x8x32xf32>
    tpu.vector_store %arg4[%c0_78, %153, %c0_79], %152 {strides = array<i32>} : memref<2x64x32xf32, #tpu.memory_space<vmem>>, vector<2x8x32xf32>,
    %c8_i32_80 = arith.constant 8 : i32
    return
  }
  func.func @transform_0(%arg0: i32) -> (i32, i32, i32) {
    %c0_i32 = arith.constant 0 : i32
    %c0_i32_0 = arith.constant 0 : i32
    %c0_i32_1 = arith.constant 0 : i32
    return %arg0, %c0_i32, %c0_i32_0 : i32, i32, i32
  }
  func.func @transform_1(%arg0: i32) -> (i32, i32) {
    %c0_i32 = arith.constant 0 : i32
    %c0_i32_0 = arith.constant 0 : i32
    %c0_i32_1 = arith.constant 0 : i32
    return %c0_i32, %c0_i32_0 : i32, i32
  }
  func.func @transform_2(%arg0: i32) -> (i32, i32) {
    %c0_i32 = arith.constant 0 : i32
    %c0_i32_0 = arith.constant 0 : i32
    %c0_i32_1 = arith.constant 0 : i32
    return %c0_i32, %c0_i32_0 : i32, i32
  }
  func.func @transform_3(%arg0: i32) -> (i32, i32, i32) {
    %c0_i32 = arith.constant 0 : i32
    %c0_i32_0 = arith.constant 0 : i32
    %c0_i32_1 = arith.constant 0 : i32
    return %arg0, %c0_i32, %c0_i32_0 : i32, i32, i32
  }
}

</mosaic_0001>

<llo_original>
// kernel: tpu_custom_call.1
$region0: #{tpu_custom_call.1}
  #allocation0 [shape = 'u32[]', space=smem, size = 0x4, offset = 0x4, fixed_abs, tag = 'smem constant byte address 0x4 - core index']
  #allocation1 [shape = 'u32[144,128]{1,0:T(1,128)}', space=vmem, size = 0x12000, scoped, tag = 'internal scratch']
  %s0 = inlined_call_operand.vmem [shape: f32[2,64,32], index: 0, kind: input, shape index: {}]
  %s1 = inlined_call_operand.vmem [shape: f32[1,32], index: 1, kind: input, shape index: {}]
  %s2 = inlined_call_operand.vmem [shape: f32[1,32], index: 2, kind: input, shape index: {}]
  %s3 = inlined_call_operand.vmem [shape: f32[2,64,32], index: 3, kind: output, shape index: {}]
  %s4 = sld [smem:[#allocation0]]
  $region22: #{tpu_custom_call.1} parent=0
    _
  %s6 = ssub.s32 1, %s4
  %s7 = scalar_select 0, %s6, %s4
  // Predicated region
  $region2: #{tpu_custom_call.1} parent=0 // pred_check
    _
  $region3: #{tpu_custom_call.1} parent=0 // pred_check_branch
    %9 = sbr.rel (0) target = $region5
  $region4: #{tpu_custom_call.1} parent=0 // pred_region
    _
  $region5: #{tpu_custom_call.1} parent=0 // pred_fallthru
    _
  // Predicated region
  $region6: #{tpu_custom_call.1} parent=0 // pred_check
    _
  $region7: #{tpu_custom_call.1} parent=0 // pred_check_branch
    %11 = sbr.rel (0) target = $region9
  $region8: #{tpu_custom_call.1} parent=0 // pred_region
    _
  $region9: #{tpu_custom_call.1} parent=0 // pred_fallthru
    _
  // Predicated region
  $region10: #{tpu_custom_call.1} parent=0 // pred_check
    _
  $region11: #{tpu_custom_call.1} parent=0 // pred_check_branch
    %13 = sbr.rel (0) target = $region13
  $region12: #{tpu_custom_call.1} parent=0 // pred_region
    _
  $region13: #{tpu_custom_call.1} parent=0 // pred_fallthru
    _
  %v14 = vld [vmem:[%s0] sm:$0xff]
  %v15 = vld [vmem:[%s0 + $0x40] sm:$0xff]
  %v16 = vmul.f32 %v14, %v14
  %v17 = vmul.f32 %v15, %v15
  %v18 = vadd.f32 %v16, 0.0
  %v19 = vadd.f32 %v17, 0.0
  %s20 = scalar_lea.vmem %s0, 8
  %v21 = vld [vmem:[%s20] sm:$0xff]
  %v22 = vld [vmem:[%s20 + $0x40] sm:$0xff]
  %v23 = vmul.f32 %v21, %v21
  %v24 = vmul.f32 %v22, %v22
  %v25 = vadd.f32 %v18, %v23
  %v26 = vadd.f32 %v19, %v24
  %s27 = scalar_lea.vmem %s0, 16
  %v28 = vld [vmem:[%s27] sm:$0xff]
  %v29 = vld [vmem:[%s27 + $0x40] sm:$0xff]
  %v30 = vmul.f32 %v28, %v28
  %v31 = vmul.f32 %v29, %v29
  %v32 = vadd.f32 %v25, %v30
  %v33 = vadd.f32 %v26, %v31
  %s34 = scalar_lea.vmem %s0, 24
  %v35 = vld [vmem:[%s34] sm:$0xff]
  %v36 = vld [vmem:[%s34 + $0x40] sm:$0xff]
  %v37 = vmul.f32 %v35, %v35
  %v38 = vmul.f32 %v36, %v36
  %v39 = vadd.f32 %v32, %v37
  %v40 = vadd.f32 %v33, %v38
  %s41 = scalar_lea.vmem %s0, 32
  %v42 = vld [vmem:[%s41] sm:$0xff]
  %v43 = vld [vmem:[%s41 + $0x40] sm:$0xff]
  %v44 = vmul.f32 %v42, %v42
  %v45 = vmul.f32 %v43, %v43
  %v46 = vadd.f32 %v39, %v44
  %v47 = vadd.f32 %v40, %v45
  %s48 = scalar_lea.vmem %s0, 40
  %v49 = vld [vmem:[%s48] sm:$0xff]
  %v50 = vld [vmem:[%s48 + $0x40] sm:$0xff]
  %v51 = vmul.f32 %v49, %v49
  %v52 = vmul.f32 %v50, %v50
  %v53 = vadd.f32 %v46, %v51
  %v54 = vadd.f32 %v47, %v52
  %s55 = scalar_lea.vmem %s0, 48
  %v56 = vld [vmem:[%s55] sm:$0xff]
  %v57 = vld [vmem:[%s55 + $0x40] sm:$0xff]
  %v58 = vmul.f32 %v56, %v56
  %v59 = vmul.f32 %v57, %v57
  %v60 = vadd.f32 %v53, %v58
  %v61 = vadd.f32 %v54, %v59
  %s62 = scalar_lea.vmem %s0, 56
  %v63 = vld [vmem:[%s62] sm:$0xff]
  %v64 = vld [vmem:[%s62 + $0x40] sm:$0xff]
  %v65 = vmul.f32 %v63, %v63
  %v66 = vmul.f32 %v64, %v64
  %v67 = vadd.f32 %v60, %v65
  %v68 = vadd.f32 %v61, %v66
  %vm69 = vcmask 261120
  %v70 = vsel %vm69, %v67, 0.0
  %v71 = vrot.slane %v70, 4
  %v72 = vadd.f32 %v70, %v71
  %v73 = vrot.slane %v72, 2
  %v74 = vadd.f32 %v72, %v73
  %v75 = vrot.slane %v74, 1
  %v76 = vadd.f32 %v74, %v75
  %v77 = vsel %vm69, %v68, 0.0
  %v78 = vrot.slane %v77, 4
  %v79 = vadd.f32 %v77, %v78
  %v80 = vrot.slane %v79, 2
  %v81 = vadd.f32 %v79, %v80
  %v82 = vrot.slane %v81, 1
  %v83 = vadd.f32 %v81, %v82
  %v84 = vrsqrt.pop %v76
  %v85 = vmul.f32 %v76, %v84
  %vm86 = vcmp.eq.f32.partialorder %v76, inf
  %v87 = vsel %vm86, %v76, %v85
  %vm88 = vcmp.eq.f32.partialorder %v76, 0.0
  %v89 = vand.u32 %v76, 2147483648
  %v90 = vsel %vm88, %v89, %v87
  %v91 = vrsqrt.pop %v83
  %v92 = vmul.f32 %v83, %v91
  %vm93 = vcmp.eq.f32.partialorder %v83, inf
  %v94 = vsel %vm93, %v83, %v92
  %vm95 = vcmp.eq.f32.partialorder %v83, 0.0
  %v96 = vand.u32 %v83, 2147483648
  %v97 = vsel %vm95, %v96, %v94
  %v98 = vsel %vm69, %v90, 0.0
  %99 = vadd.xlane.f32.xlu0 %v98
  %v100 = vpop.xlane.xlu0 %99
  %v101 = vsel %vm69, %v97, 0.0
  %102 = vadd.xlane.f32.xlu0 %v101
  %v103 = vpop.xlane.xlu0 %102
  %v104 = vmul.f32 %v100, 0.03125
  %v105 = vmul.f32 %v103, 0.03125
  %v106 = vadd.f32 %v104, 1e-06
  %v107 = vadd.f32 %v105, 1e-06
  %v108 = vrcp.pop %v106
  %v109 = vmul.f32 %v90, %v108
  %v110 = vrcp.pop %v107
  %v111 = vmul.f32 %v97, %v110
  %v112 = vld [vmem:[%s1] sm:$0x1]
  %v113 = vld [vmem:[%s2] sm:$0x1]
  %v114 = vmul.f32 %v112, %v109
  %v115 = vmul.f32 %v112, %v111
  %v116 = vadd.f32 %v114, 1.0
  %v117 = vadd.f32 %v115, 1.0
  %v120 = vlaneseq
  %v121 = vshrl.u32 %v120, 7
  %v122 = vsub.s32 0, %v121
  %v123 = vrot.slane %v116, %v122
  %v124 = vlaneseq
  %v125 = vshrl.u32 %v124, 7
  %v126 = vsub.s32 0, %v125
  %v127 = vrot.slane %v117, %v126
  %v130 = vmul.f32 %v14, %v123
  %v131 = vmul.f32 %v15, %v127
  %v133 = vlaneseq
  %v134 = vshrl.u32 %v133, 7
  %v135 = vsub.s32 0, %v134
  %v136 = vrot.slane %v113, %v135
  %v138 = vadd.f32 %v130, %v136
  %v139 = vadd.f32 %v131, %v136
  %140 = vst.msk [vmem:[%s3] sm:$0xff] %vm69, %v138
  %141 = vst.msk [vmem:[%s3 + $0x40] sm:$0xff] %vm69, %v139
  %v142 = vld [vmem:[%s20] sm:$0xff]
  %v143 = vld [vmem:[%s20 + $0x40] sm:$0xff]
  %v144 = vmul.f32 %v142, %v123
  %v145 = vmul.f32 %v143, %v127
  %v146 = vadd.f32 %v144, %v136
  %v147 = vadd.f32 %v145, %v136
  %s148 = scalar_lea.vmem %s3, 8
  %149 = vst.msk [vmem:[%s148] sm:$0xff] %vm69, %v146
  %150 = vst.msk [vmem:[%s148 + $0x40] sm:$0xff] %vm69, %v147
  %v151 = vld [vmem:[%s27] sm:$0xff]
  %v152 = vld [vmem:[%s27 + $0x40] sm:$0xff]
  %v153 = vmul.f32 %v151, %v123
  %v154 = vmul.f32 %v152, %v127
  %v155 = vadd.f32 %v153, %v136
  %v156 = vadd.f32 %v154, %v136
  %s157 = scalar_lea.vmem %s3, 16
  %158 = vst.msk [vmem:[%s157] sm:$0xff] %vm69, %v155
  %159 = vst.msk [vmem:[%s157 + $0x40] sm:$0xff] %vm69, %v156
  %v160 = vld [vmem:[%s34] sm:$0xff]
  %v161 = vld [vmem:[%s34 + $0x40] sm:$0xff]
  %v162 = vmul.f32 %v160, %v123
  %v163 = vmul.f32 %v161, %v127
  %v164 = vadd.f32 %v162, %v136
  %v165 = vadd.f32 %v163, %v136
  %s166 = scalar_lea.vmem %s3, 24
  %167 = vst.msk [vmem:[%s166] sm:$0xff] %vm69, %v164
  %168 = vst.msk [vmem:[%s166 + $0x40] sm:$0xff] %vm69, %v165
  %v169 = vld [vmem:[%s41] sm:$0xff]
  %v170 = vld [vmem:[%s41 + $0x40] sm:$0xff]
  %v171 = vmul.f32 %v169, %v123
  %v172 = vmul.f32 %v170, %v127
  %v173 = vadd.f32 %v171, %v136
  %v174 = vadd.f32 %v172, %v136
  %s175 = scalar_lea.vmem %s3, 32
  %176 = vst.msk [vmem:[%s175] sm:$0xff] %vm69, %v173
  %177 = vst.msk [vmem:[%s175 + $0x40] sm:$0xff] %vm69, %v174
  %v178 = vld [vmem:[%s48] sm:$0xff]
  %v179 = vld [vmem:[%s48 + $0x40] sm:$0xff]
  %v180 = vmul.f32 %v178, %v123
  %v181 = vmul.f32 %v179, %v127
  %v182 = vadd.f32 %v180, %v136
  %v183 = vadd.f32 %v181, %v136
  %s184 = scalar_lea.vmem %s3, 40
  %185 = vst.msk [vmem:[%s184] sm:$0xff] %vm69, %v182
  %186 = vst.msk [vmem:[%s184 + $0x40] sm:$0xff] %vm69, %v183
  %v187 = vld [vmem:[%s55] sm:$0xff]
  %v188 = vld [vmem:[%s55 + $0x40] sm:$0xff]
  %v189 = vmul.f32 %v187, %v123
  %v190 = vmul.f32 %v188, %v127
  %v191 = vadd.f32 %v189, %v136
  %v192 = vadd.f32 %v190, %v136
  %s193 = scalar_lea.vmem %s3, 48
  %194 = vst.msk [vmem:[%s193] sm:$0xff] %vm69, %v191
  %195 = vst.msk [vmem:[%s193 + $0x40] sm:$0xff] %vm69, %v192
  %v196 = vld [vmem:[%s62] sm:$0xff]
  %v197 = vld [vmem:[%s62 + $0x40] sm:$0xff]
  %v198 = vmul.f32 %v196, %v123
  %v199 = vmul.f32 %v197, %v127
  %v200 = vadd.f32 %v198, %v136
  %v201 = vadd.f32 %v199, %v136
  %s202 = scalar_lea.vmem %s3, 56
  %203 = vst.msk [vmem:[%s202] sm:$0xff] %vm69, %v200
  %204 = vst.msk [vmem:[%s202 + $0x40] sm:$0xff] %vm69, %v201
  // Predicated region
  $region14: #{tpu_custom_call.1} parent=0 // pred_check
    _
  $region15: #{tpu_custom_call.1} parent=0 // pred_check_branch
    %206 = sbr.rel (0) target = $region17
  $region16: #{tpu_custom_call.1} parent=0 // pred_region
    _
  $region17: #{tpu_custom_call.1} parent=0 // pred_fallthru
    _
  // Predicated region
  $region18: #{tpu_custom_call.1} parent=0 // pred_check
    _
  $region19: #{tpu_custom_call.1} parent=0 // pred_check_branch
    %208 = sbr.rel (0) target = $region21
  $region20: #{tpu_custom_call.1} parent=0 // pred_region
    _
  $region21: #{tpu_custom_call.1} parent=0 // pred_fallthru
    _

</llo_original>
